<compile_context>
chip_gen: v5e
topology: v5e:2x2
jax: 0.10.0
libtpu: 0.0.40
codegen_flags: <defaults>
</compile_context>

<pallas_src>
import functools
import math

import jax
import jax.numpy as jnp
import numpy as np
from jax import lax
from jax.experimental import pallas as pl
from jax.experimental.pallas import tpu as pltpu

# Synthetic stand-ins for cfg.TRAIN.REG_MAX / cfg.TRACK.STRIDE (deterministic,
# defined in-script; REG_MAX == 0 means no stride rescaling, the default path).
REG_MAX = 0
STRIDE = 8.0

LANE = 128
MAX_ROWS_PER_BLOCK = 128   # 128 sublane rows * 128 lanes = 16384 boxes / step


def _cdiv(a, b):
    return -(-a // b)


def _round_up(a, b):
    return _cdiv(a, b) * b


def _compute_losses(pred, target, *, name, gama, reg_max, stride):
    """Elementwise IoU-family loss on (4,R,128) slabs; mirrors the torch math."""
    eps = jnp.float32(1e-5)
    if reg_max > 0:  # static (config) branch, mirrors `if cfg.TRAIN.REG_MAX > 0`
        pred = pred * jnp.float32(stride)
        target = target * jnp.float32(stride)

    p_l, p_t, p_r, p_b = pred[0], pred[1], pred[2], pred[3]
    t_l, t_t, t_r, t_b = target[0], target[1], target[2], target[3]

    target_area = (t_l + t_r) * (t_t + t_b)
    pred_area = (p_l + p_r) * (p_t + p_b)
    w_intersect = jnp.minimum(p_l, t_l) + jnp.minimum(p_r, t_r)
    h_intersect = jnp.minimum(p_b, t_b) + jnp.minimum(p_t, t_t)
    area_intersect = w_intersect * h_intersect
    area_union = jnp.maximum(target_area + pred_area - area_intersect, eps)
    iou = area_intersect / area_union

    # enclose_wh = (max(pred[:,2:],target[:,2:]) + max(pred[:,:2],target[:,:2])).clamp(0)
    enclose_w = jnp.maximum(jnp.maximum(p_r, t_r) + jnp.maximum(p_l, t_l), 0.0)
    enclose_h = jnp.maximum(jnp.maximum(p_b, t_b) + jnp.maximum(p_t, t_t), 0.0)
    enclose_area = enclose_w * enclose_h

    predcenter_x = (p_r - p_l) * 0.5
    predcenter_y = (p_t - p_b) * 0.5
    targetcenter_x = (t_r - t_l) * 0.5
    targetcenter_y = (t_t - t_b) * 0.5
    inter_diag = (predcenter_x - targetcenter_x) ** 2 + (predcenter_y - targetcenter_y) ** 2
    outer_diag = enclose_w ** 2 + enclose_h ** 2

    # `name` is a compile-time Python string => static branch selection.
    if name == 'logiou':
        losses = -jnp.log(iou)
    elif name == 'giou':
        gious = iou - (enclose_area - area_union) / enclose_area
        losses = 1.0 - gious
    elif 'diou' in name:
        losses = 1.0 - iou + inter_diag / outer_diag
        if 'log' in name:
            losses = -jnp.log(1.0 - losses / 2.0)
    elif 'ciou' in name:
        w2 = t_l + t_r
        h2 = t_t + t_b
        w1 = p_l + p_r
        h1 = p_t + p_b
        v = (4.0 / math.pi ** 2) * (jnp.arctan(w2 / h2) - jnp.arctan(w1 / h1)) ** 2
        S = 1.0 - iou
        alpha = v / jnp.maximum(S + v, eps)
        losses = 1.0 - iou + inter_diag / outer_diag + alpha * v
        if 'log' in name:
            losses = -jnp.log(1.0 - losses / 3.0)
    elif 'eiou' in name:
        lw = (t_l + t_r - (p_l + p_r)) ** 2.0
        lh = (t_t + t_b - (p_t + p_b)) ** 2.0
        outer_d = jnp.maximum(outer_diag, eps)
        enc_w = jnp.maximum(enclose_w, eps)
        enc_h = jnp.maximum(enclose_h, eps)
        losses = (1.0 - iou + inter_diag / outer_d
                  + lw / enc_w ** 2 + lh / enc_h ** 2)
        if 'f' in name or 'F' in name:
            losses = losses * iou ** gama
        if 'log' in name:
            losses = -jnp.log(1.0 - losses / 4.0)
    else:  # default name == 'iou'
        losses = 1.0 - iou
    return losses


def _iou_sum_kernel(*refs, name, gama, reg_max, stride, n_valid,
                    rows_per_block, steps_per_core, has_weight):
    if has_weight:
        pred_ref, target_ref, weight_ref, out_ref, acc_ref = refs
    else:
        pred_ref, target_ref, out_ref, acc_ref = refs
        weight_ref = None

    c = pl.program_id(0)          # parallel axis (TensorCore split on v7x)
    s = pl.program_id(1)          # reduction axis (arbitrary)

    @pl.when(s == 0)
    def _init():
        acc_ref[...] = jnp.zeros_like(acc_ref)

    losses = _compute_losses(pred_ref[...], target_ref[...], name=name,
                             gama=gama, reg_max=reg_max, stride=stride)

    block_elems = rows_per_block * LANE
    base = (c * steps_per_core + s) * block_elems
    # True only for blocks that overlap (or lie past) the zero-padded tail.
    is_tail = (base + block_elems) > n_valid

    def accumulate(loss_vals):
        acc_ref[0] += loss_vals
        if has_weight:
            w = weight_ref[...]
            acc_ref[1] += loss_vals * w
            acc_ref[2] += w            # padded weight lanes are 0 -> exact sum

    @pl.when(jnp.logical_not(is_tail))
    def _interior():
        accumulate(losses)

    @pl.when(is_tail)
    def _tail():
        row = lax.broadcasted_iota(jnp.int32, (rows_per_block, LANE), 0)
        lane = lax.broadcasted_iota(jnp.int32, (rows_per_block, LANE), 1)
        valid = (base + row * LANE + lane) < n_valid
        accumulate(jnp.where(valid, losses, 0.0))

    @pl.when(s == steps_per_core - 1)
    def _finalize():
        out_ref[...] = acc_ref[...]


def iou_loss(pred, target, weight=None, name='iou', gama=0.5,
             reg_max=REG_MAX, stride=STRIDE):
    pred = jnp.asarray(pred, jnp.float32)
    target = jnp.asarray(target, jnp.float32)
    n = pred.shape[0]
    assert pred.shape == (n, 4) and target.shape == (n, 4)
    assert n > 0  # mirrors `assert losses.numel() != 0`

    # --- tiling ---------------------------------------------------------
    k = _cdiv(n, LANE)                          # number of 128-wide lane rows
    num_par = 2 if k >= 64 else 1               # second TC on v7x; harmless elsewhere
    rows_per_block = min(MAX_ROWS_PER_BLOCK, _round_up(_cdiv(k, num_par), 8))
    steps_per_core = _cdiv(k, num_par * rows_per_block)
    k_pad = num_par * steps_per_core * rows_per_block
    npad = k_pad * LANE

    # --- host-side layout plumbing: (N,4) -> (4, k_pad, 128) slabs -------
    # Pad with 1.0 so padded lanes stay finite in every loss branch (masked out).
    def to_slabs(x):
        xt = jnp.transpose(x)                                   # (4, N)
        xt = jnp.pad(xt, ((0, 0), (0, npad - n)), constant_values=1.0)
        return xt.reshape(4, k_pad, LANE)

    pred_p = to_slabs(pred)
    target_p = to_slabs(target)

    has_weight = weight is not None
    n_sums = 3 if has_weight else 1   # [sum(losses), sum(losses*w), sum(w)]

    box_spec = pl.BlockSpec((4, rows_per_block, LANE),
                            lambda c, s: (0, c * steps_per_core + s, 0))
    in_specs = [box_spec, box_spec]
    args = [pred_p, target_p]
    if has_weight:
        w = jnp.asarray(weight, jnp.float32).reshape(n)
        w_p = jnp.pad(w, (0, npad - n)).reshape(k_pad, LANE)    # zero-padded
        in_specs.append(pl.BlockSpec((rows_per_block, LANE),
                                     lambda c, s: (c * steps_per_core + s, 0)))
        args.append(w_p)

    kernel = functools.partial(
        _iou_sum_kernel, name=name, gama=gama, reg_max=reg_max, stride=stride,
        n_valid=n, rows_per_block=rows_per_block,
        steps_per_core=steps_per_core, has_weight=has_weight)

    partial_sums = pl.pallas_call(
        kernel,
        out_shape=jax.ShapeDtypeStruct(
            (num_par * n_sums, rows_per_block, LANE), jnp.float32),
        grid_spec=pltpu.PrefetchScalarGridSpec(
            num_scalar_prefetch=0,
            grid=(num_par, steps_per_core),
            in_specs=in_specs,
            out_specs=pl.BlockSpec((n_sums, rows_per_block, LANE),
                                   lambda c, s: (c, 0, 0)),
            scratch_shapes=[pltpu.VMEM((n_sums, rows_per_block, LANE),
                                       jnp.float32)],
        ),
        compiler_params=pltpu.CompilerParams(
            dimension_semantics=("parallel", "arbitrary")),
    )(*args)

    # Tiny final reduction of the per-core partial-sum slabs (host/XLA side).
    sums = partial_sums.reshape(num_par, n_sums, rows_per_block, LANE).sum(
        axis=(0, 2, 3))                                          # (n_sums,)

    mean = sums[0] / jnp.float32(n)
    if not has_weight:
        return mean
    # `if weight is not None and weight.sum() > 0` (data-dependent part in JAX)
    wsum = sums[2]
    return jnp.where(wsum > 0, sums[1] / wsum, mean)


def iou_loss_ref(pred, target, weight=None, name='iou', gama=0.5,
                 reg_max=REG_MAX, stride=STRIDE):
    """Pure-JAX reference mirroring the PyTorch forward."""
    pred = jnp.asarray(pred, jnp.float32)
    target = jnp.asarray(target, jnp.float32)
    if reg_max > 0:
        pred = pred * stride
        target = target * stride
    eps = jnp.float32(1e-5)
    p_l, p_t, p_r, p_b = pred[:, 0], pred[:, 1], pred[:, 2], pred[:, 3]
    t_l, t_t, t_r, t_b = target[:, 0], target[:, 1], target[:, 2], target[:, 3]
    target_area = (t_l + t_r) * (t_t + t_b)
    pred_area = (p_l + p_r) * (p_t + p_b)
    w_i = jnp.minimum(p_l, t_l) + jnp.minimum(p_r, t_r)
    h_i = jnp.minimum(p_b, t_b) + jnp.minimum(p_t, t_t)
    area_i = w_i * h_i
    area_u = jnp.maximum(target_area + pred_area - area_i, eps)
    iou = area_i / area_u
    enclose_w = jnp.maximum(jnp.maximum(p_r, t_r) + jnp.maximum(p_l, t_l), 0.0)
    enclose_h = jnp.maximum(jnp.maximum(p_b, t_b) + jnp.maximum(p_t, t_t), 0.0)
    enclose_area = enclose_w * enclose_h
    inter_diag = (((p_r - p_l) - (t_r - t_l)) * 0.5) ** 2 + \
                 (((p_t - p_b) - (t_t - t_b)) * 0.5) ** 2
    outer_diag = enclose_w ** 2 + enclose_h ** 2
    if name == 'logiou':
        losses = -jnp.log(iou)
    elif name == 'giou':
        losses = 1.0 - (iou - (enclose_area - area_u) / enclose_area)
    elif 'diou' in name:
        losses = 1.0 - iou + inter_diag / outer_diag
        if 'log' in name:
            losses = -jnp.log(1.0 - losses / 2.0)
    elif 'ciou' in name:
        v = (4.0 / math.pi ** 2) * (jnp.arctan((t_l + t_r) / (t_t + t_b)) -
                                    jnp.arctan((p_l + p_r) / (p_t + p_b))) ** 2
        alpha = v / jnp.maximum(1.0 - iou + v, eps)
        losses = 1.0 - iou + inter_diag / outer_diag + alpha * v
        if 'log' in name:
            losses = -jnp.log(1.0 - losses / 3.0)
    elif 'eiou' in name:
        lw = (t_l + t_r - (p_l + p_r)) ** 2
        lh = (t_t + t_b - (p_t + p_b)) ** 2
        losses = (1.0 - iou + inter_diag / jnp.maximum(outer_diag, eps)
                  + lw / jnp.maximum(enclose_w, eps) ** 2
                  + lh / jnp.maximum(enclose_h, eps) ** 2)
        if 'f' in name or 'F' in name:
            losses = losses * iou ** gama
        if 'log' in name:
            losses = -jnp.log(1.0 - losses / 4.0)
    else:
        losses = 1.0 - iou
    if weight is not None:
        w = jnp.asarray(weight, jnp.float32)
        return jnp.where(jnp.sum(w) > 0,
                         jnp.sum(losses * w) / jnp.sum(w), jnp.mean(losses))
    return jnp.mean(losses)


def _rand_boxes(key, n):
    k1, k2, k3 = jax.random.split(key, 3)
    # box-side distances must be positive
    pred = jnp.abs(jax.random.normal(k1, (n, 4), dtype=jnp.float32)) * 4.0 + 0.5
    target = jnp.abs(jax.random.normal(k2, (n, 4), dtype=jnp.float32)) * 4.0 + 0.5
    weight = jax.random.uniform(k3, (n,), dtype=jnp.float32)
    return pred, target, weight


if __name__ == "__main__":
    key = jax.random.PRNGKey(0)
    k_small, k_mid, k_big = jax.random.split(key, 3)

    # Small: N not a multiple of 128 -> exercises padding + in-kernel tail mask.
    N = 200
    pred, target, weight = _rand_boxes(k_small, N)
    checks = [
        ('iou', None),       # default path, mean
        ('giou', None),      # giou branch
        ('logiou', None),    # log branch (EUP)
        ('ciou', weight),    # ciou branch, weighted
        ('iou', weight),     # weighted path
    ]
    for name, w in checks:
        out = jax.block_until_ready(iou_loss(pred, target, weight=w, name=name))
        ref = iou_loss_ref(pred, target, weight=w, name=name)
        np.testing.assert_allclose(np.asarray(out), np.asarray(ref),
                                   rtol=1e-4, atol=1e-5)
        assert np.isfinite(np.asarray(out))

    # Mid: exercises the 2-way parallel grid axis + tail mask on one core only.
    N2 = 9300
    pred2, target2, weight2 = _rand_boxes(k_mid, N2)
    out = jax.block_until_ready(iou_loss(pred2, target2, weight=weight2, name='iou'))
    ref = iou_loss_ref(pred2, target2, weight=weight2, name='iou')
    np.testing.assert_allclose(np.asarray(out), np.asarray(ref),
                               rtol=2e-4, atol=1e-5)

    # Large: exercises the multi-step accumulator carry (steps_per_core > 1).
    N3 = 40000
    pred3, target3, _ = _rand_boxes(k_big, N3)
    out = jax.block_until_ready(iou_loss(pred3, target3, name='giou'))
    ref = iou_loss_ref(pred3, target3, name='giou')
    np.testing.assert_allclose(np.asarray(out), np.asarray(ref),
                               rtol=2e-4, atol=1e-5)

    print("KERNEL_OK")
</pallas_src>

<mosaic_0001>
module attributes {stable_mosaic.version = 11 : i64} {
  func.func @_iou_sum_kernel(%arg0: i32, %arg1: i32, %arg2: memref<4x8x128xf32, #tpu.memory_space<vmem>>, %arg3: memref<4x8x128xf32, #tpu.memory_space<vmem>>, %arg4: memref<1x8x128xf32, #tpu.memory_space<vmem>>, %arg5: memref<1x8x128xf32, #tpu.memory_space<vmem>>) attributes {dimension_semantics = [#tpu.dimension_semantics<parallel>, #tpu.dimension_semantics<arbitrary>], iteration_bounds = array<i64: 1, 1>, scalar_prefetch = 0 : i64, scratch_operands = 1 : i64, tpu.core_type = #tpu.core_type<tc>, window_params = [{transform_indices = @transform_0, window_bounds = array<i64: 4, 8, 128>}, {transform_indices = @transform_1, window_bounds = array<i64: 4, 8, 128>}, {transform_indices = @transform_2, window_bounds = array<i64: 1, 8, 128>}]} {
    %c0_i32 = arith.constant 0 : i32
    %0 = arith.cmpi eq, %arg1, %c0_i32 : i32
    %1 = arith.extui %0 : i1 to i32
    %c0_i32_0 = arith.constant 0 : i32
    %2 = arith.cmpi ne, %1, %c0_i32_0 : i32
    scf.if %2 {
      %cst_12 = arith.constant 0.000000e+00 : f32
      %54 = vector.broadcast %cst_12 : f32 to vector<1x8x128xf32>
      %c0_13 = arith.constant 0 : index
      %c0_14 = arith.constant 0 : index
      %c0_15 = arith.constant 0 : index
      %55 = vector.load %arg5[%c0_13, %c0_14, %c0_15] : memref<1x8x128xf32, #tpu.memory_space<vmem>>, vector<1x8x128xf32>
      tpu.vector_store %arg5[%c0_13, %c0_14, %c0_15], %54 {strides = array<i32>} : memref<1x8x128xf32, #tpu.memory_space<vmem>>, vector<1x8x128xf32>,
    } else {
    }
    %c0 = arith.constant 0 : index
    %c0_1 = arith.constant 0 : index
    %c0_2 = arith.constant 0 : index
    %3 = vector.load %arg2[%c0, %c0_1, %c0_2] : memref<4x8x128xf32, #tpu.memory_space<vmem>>, vector<4x8x128xf32>
    %c0_3 = arith.constant 0 : index
    %c0_4 = arith.constant 0 : index
    %c0_5 = arith.constant 0 : index
    %4 = vector.load %arg3[%c0_3, %c0_4, %c0_5] : memref<4x8x128xf32, #tpu.memory_space<vmem>>, vector<4x8x128xf32>
    %5 = vector.extract_strided_slice %3 {offsets = [0, 0, 0], sizes = [1, 8, 128], strides = [1, 1, 1]} : vector<4x8x128xf32> to vector<1x8x128xf32>
    %6 = vector.shape_cast %5 : vector<1x8x128xf32> to vector<8x128xf32>
    %7 = vector.extract_strided_slice %3 {offsets = [1, 0, 0], sizes = [1, 8, 128], strides = [1, 1, 1]} : vector<4x8x128xf32> to vector<1x8x128xf32>
    %8 = vector.shape_cast %7 : vector<1x8x128xf32> to vector<8x128xf32>
    %9 = vector.extract_strided_slice %3 {offsets = [2, 0, 0], sizes = [1, 8, 128], strides = [1, 1, 1]} : vector<4x8x128xf32> to vector<1x8x128xf32>
    %10 = vector.shape_cast %9 : vector<1x8x128xf32> to vector<8x128xf32>
    %11 = vector.extract_strided_slice %3 {offsets = [3, 0, 0], sizes = [1, 8, 128], strides = [1, 1, 1]} : vector<4x8x128xf32> to vector<1x8x128xf32>
    %12 = vector.shape_cast %11 : vector<1x8x128xf32> to vector<8x128xf32>
    %13 = vector.extract_strided_slice %4 {offsets = [0, 0, 0], sizes = [1, 8, 128], strides = [1, 1, 1]} : vector<4x8x128xf32> to vector<1x8x128xf32>
    %14 = vector.shape_cast %13 : vector<1x8x128xf32> to vector<8x128xf32>
    %15 = vector.extract_strided_slice %4 {offsets = [1, 0, 0], sizes = [1, 8, 128], strides = [1, 1, 1]} : vector<4x8x128xf32> to vector<1x8x128xf32>
    %16 = vector.shape_cast %15 : vector<1x8x128xf32> to vector<8x128xf32>
    %17 = vector.extract_strided_slice %4 {offsets = [2, 0, 0], sizes = [1, 8, 128], strides = [1, 1, 1]} : vector<4x8x128xf32> to vector<1x8x128xf32>
    %18 = vector.shape_cast %17 : vector<1x8x128xf32> to vector<8x128xf32>
    %19 = vector.extract_strided_slice %4 {offsets = [3, 0, 0], sizes = [1, 8, 128], strides = [1, 1, 1]} : vector<4x8x128xf32> to vector<1x8x128xf32>
    %20 = vector.shape_cast %19 : vector<1x8x128xf32> to vector<8x128xf32>
    %21 = arith.addf %14, %18 : vector<8x128xf32>
    %22 = arith.addf %16, %20 : vector<8x128xf32>
    %23 = arith.mulf %21, %22 : vector<8x128xf32>
    %24 = arith.addf %6, %10 : vector<8x128xf32>
    %25 = arith.addf %8, %12 : vector<8x128xf32>
    %26 = arith.mulf %24, %25 : vector<8x128xf32>
    %27 = arith.minimumf %6, %14 : vector<8x128xf32>
    %28 = arith.minimumf %10, %18 : vector<8x128xf32>
    %29 = arith.addf %27, %28 : vector<8x128xf32>
    %30 = arith.minimumf %12, %20 : vector<8x128xf32>
    %31 = arith.minimumf %8, %16 : vector<8x128xf32>
    %32 = arith.addf %30, %31 : vector<8x128xf32>
    %33 = arith.mulf %29, %32 : vector<8x128xf32>
    %34 = arith.addf %23, %26 : vector<8x128xf32>
    %35 = arith.subf %34, %33 : vector<8x128xf32>
    %cst = arith.constant 9.99999974E-6 : f32
    %36 = vector.broadcast %cst : f32 to vector<8x128xf32>
    %37 = arith.maximumf %35, %36 : vector<8x128xf32>
    %38 = arith.divf %33, %37 : vector<8x128xf32>
    %cst_6 = arith.constant 1.000000e+00 : f32
    %39 = vector.broadcast %cst_6 : f32 to vector<8x128xf32>
    %40 = arith.subf %39, %38 : vector<8x128xf32>
    %c1_i32 = arith.constant 1 : i32
    %41 = arith.muli %arg0, %c1_i32 : i32
    %42 = arith.addi %41, %arg1 : i32
    %c1024_i32 = arith.constant 1024 : i32
    %43 = arith.muli %42, %c1024_i32 : i32
    %c1024_i32_7 = arith.constant 1024 : i32
    %44 = arith.addi %43, %c1024_i32_7 : i32
    %c200_i32 = arith.constant 200 : i32
    %45 = arith.cmpi sgt, %44, %c200_i32 : i32
    %true = arith.constant true
    %46 = arith.xori %45, %true : i1
    %47 = arith.extui %46 : i1 to i32
    %c0_i32_8 = arith.constant 0 : i32
    %48 = arith.cmpi ne, %47, %c0_i32_8 : i32
    scf.if %48 {
      %c0_12 = arith.constant 0 : index
      %c0_13 = arith.constant 0 : index
      %c0_14 = arith.constant 0 : index
      %54 = vector.load %arg5[%c0_12, %c0_13, %c0_14] : memref<1x8x128xf32, #tpu.memory_space<vmem>>, vector<1x8x128xf32>
      %55 = vector.shape_cast %54 : vector<1x8x128xf32> to vector<8x128xf32>
      %56 = arith.addf %55, %40 : vector<8x128xf32>
      %c0_15 = arith.constant 0 : index
      %c0_16 = arith.constant 0 : index
      %c0_17 = arith.constant 0 : index
      %57 = vector.load %arg5[%c0_15, %c0_16, %c0_17] : memref<1x8x128xf32, #tpu.memory_space<vmem>>, vector<1x8x128xf32>
      %58 = vector.shape_cast %57 : vector<1x8x128xf32> to vector<8x128xf32>
      %59 = vector.shape_cast %56 : vector<8x128xf32> to vector<1x8x128xf32>
      tpu.vector_store %arg5[%c0_15, %c0_16, %c0_17], %59 {strides = array<i32>} : memref<1x8x128xf32, #tpu.memory_space<vmem>>, vector<1x8x128xf32>,
    } else {
    }
    %49 = arith.extui %45 : i1 to i32
    %c0_i32_9 = arith.constant 0 : i32
    %50 = arith.cmpi ne, %49, %c0_i32_9 : i32
    scf.if %50 {
      %54 = tpu.iota {dimensions = array<i32: 0>} : vector<8x128xi32>
      %55 = tpu.iota {dimensions = array<i32: 1>} : vector<8x128xi32>
      %c128_i32 = arith.constant 128 : i32
      %56 = vector.broadcast %c128_i32 : i32 to vector<8x128xi32>
      %57 = arith.muli %54, %56 : vector<8x128xi32>
      %58 = vector.broadcast %43 : i32 to vector<8x128xi32>
      %59 = arith.addi %58, %57 : vector<8x128xi32>
      %60 = arith.addi %59, %55 : vector<8x128xi32>
      %c200_i32_12 = arith.constant 200 : i32
      %61 = vector.broadcast %c200_i32_12 : i32 to vector<8x128xi32>
      %62 = arith.cmpi slt, %60, %61 : vector<8x128xi32>
      %cst_13 = arith.constant 0.000000e+00 : f32
      %63 = vector.broadcast %cst_13 : f32 to vector<8x128xf32>
      %64 = arith.select %62, %40, %63 : vector<8x128xi1>, vector<8x128xf32>
      %c0_14 = arith.constant 0 : index
      %c0_15 = arith.constant 0 : index
      %c0_16 = arith.constant 0 : index
      %65 = vector.load %arg5[%c0_14, %c0_15, %c0_16] : memref<1x8x128xf32, #tpu.memory_space<vmem>>, vector<1x8x128xf32>
      %66 = vector.shape_cast %65 : vector<1x8x128xf32> to vector<8x128xf32>
      %67 = arith.addf %66, %64 : vector<8x128xf32>
      %c0_17 = arith.constant 0 : index
      %c0_18 = arith.constant 0 : index
      %c0_19 = arith.constant 0 : index
      %68 = vector.load %arg5[%c0_17, %c0_18, %c0_19] : memref<1x8x128xf32, #tpu.memory_space<vmem>>, vector<1x8x128xf32>
      %69 = vector.shape_cast %68 : vector<1x8x128xf32> to vector<8x128xf32>
      %70 = vector.shape_cast %67 : vector<8x128xf32> to vector<1x8x128xf32>
      tpu.vector_store %arg5[%c0_17, %c0_18, %c0_19], %70 {strides = array<i32>} : memref<1x8x128xf32, #tpu.memory_space<vmem>>, vector<1x8x128xf32>,
    } else {
    }
    %c0_i32_10 = arith.constant 0 : i32
    %51 = arith.cmpi eq, %arg1, %c0_i32_10 : i32
    %52 = arith.extui %51 : i1 to i32
    %c0_i32_11 = arith.constant 0 : i32
    %53 = arith.cmpi ne, %52, %c0_i32_11 : i32
    scf.if %53 {
      %c0_12 = arith.constant 0 : index
      %c0_13 = arith.constant 0 : index
      %c0_14 = arith.constant 0 : index
      %54 = vector.load %arg5[%c0_12, %c0_13, %c0_14] : memref<1x8x128xf32, #tpu.memory_space<vmem>>, vector<1x8x128xf32>
      %c0_15 = arith.constant 0 : index
      %c0_16 = arith.constant 0 : index
      %c0_17 = arith.constant 0 : index
      %55 = vector.load %arg4[%c0_15, %c0_16, %c0_17] : memref<1x8x128xf32, #tpu.memory_space<vmem>>, vector<1x8x128xf32>
      tpu.vector_store %arg4[%c0_15, %c0_16, %c0_17], %54 {strides = array<i32>} : memref<1x8x128xf32, #tpu.memory_space<vmem>>, vector<1x8x128xf32>,
    } else {
    }
    return
  }
  func.func @transform_0(%arg0: i32, %arg1: i32) -> (i32, i32, i32) {
    %c1_i32 = arith.constant 1 : i32
    %0 = arith.muli %arg0, %c1_i32 : i32
    %1 = arith.addi %0, %arg1 : i32
    %c0_i32 = arith.constant 0 : i32
    %c0_i32_0 = arith.constant 0 : i32
    %c0_i32_1 = arith.constant 0 : i32
    return %c0_i32, %1, %c0_i32_0 : i32, i32, i32
  }
  func.func @transform_1(%arg0: i32, %arg1: i32) -> (i32, i32, i32) {
    %c1_i32 = arith.constant 1 : i32
    %0 = arith.muli %arg0, %c1_i32 : i32
    %1 = arith.addi %0, %arg1 : i32
    %c0_i32 = arith.constant 0 : i32
    %c0_i32_0 = arith.constant 0 : i32
    %c0_i32_1 = arith.constant 0 : i32
    return %c0_i32, %1, %c0_i32_0 : i32, i32, i32
  }
  func.func @transform_2(%arg0: i32, %arg1: i32) -> (i32, i32, i32) {
    %c0_i32 = arith.constant 0 : i32
    %c0_i32_0 = arith.constant 0 : i32
    %c0_i32_1 = arith.constant 0 : i32
    return %arg0, %c0_i32, %c0_i32_0 : i32, i32, i32
  }
}

</mosaic_0001>

<llo_original>
// kernel: tpu_custom_call.1
$region0: #{tpu_custom_call.1}
  #allocation0 [shape = 'u32[]', space=smem, size = 0x4, offset = 0x4, fixed_abs, tag = 'smem constant byte address 0x4 - core index']
  #allocation1 [shape = 'u32[72,128]{1,0:T(1,128)}', space=vmem, size = 0x9000, scoped, tag = 'internal scratch']
  #allocation2 [shape = 'f32[1,8,128]{2,1,0:T(8,128)}', space=vmem, size = 0x1000, scoped, tag = 'scratch operand']
  %s0 = inlined_call_operand.hbm [shape: f32[4,8,128], index: 0, kind: input, shape index: {}]
  %s1 = inlined_call_operand.hbm [shape: f32[4,8,128], index: 1, kind: input, shape index: {}]
  %s2 = inlined_call_operand.hbm [shape: f32[1,8,128], index: 2, kind: output, shape index: {}]
  %s3 = sld [smem:[#allocation0]]
  $region42: #{tpu_custom_call.1} parent=0
    _
  %s5 = ssub.s32 1, %s3
  %s6 = scalar_select 0, %s5, %s3
  $region1: #{tpu_custom_call.1} parent=0
    #allocation3 [shape = 'u8[16384]{0}', space=vmem, size = 0x4000, scoped, tag = 'input window, operand 0, single buffered']
    #allocation4 [shape = 's32[1]{0}', space=sflag, size = 0x4, scoped, tag = 'scoped memory for tpu_custom_call.1']
    #allocation5 [shape = 's32[1]{0}', space=sflag, size = 0x4, scoped, tag = 'scoped memory for tpu_custom_call.1']
    #allocation6 [shape = 'u8[16384]{0}', space=vmem, size = 0x4000, scoped, tag = 'input window, operand 1, single buffered']
    #allocation7 [shape = 's32[1]{0}', space=sflag, size = 0x4, scoped, tag = 'scoped memory for tpu_custom_call.1']
    #allocation8 [shape = 'u8[4096]{0}', space=vmem, size = 0x1000, scoped, tag = 'output window, operand 0, single buffered']
    %7 = vsyncpa [#allocation4], 0
    %8 = vsyncpa [#allocation7], 0
    %9 = vsyncpa [#allocation5], 0
    // Predicated region
    $region2: #{tpu_custom_call.1} parent=1 // pred_check
      _
    $region3: #{tpu_custom_call.1} parent=1 // pred_check_branch
      %11 = sbr.rel (0) target = $region5
    $region4: #{tpu_custom_call.1} parent=1 // pred_region
      %s12 = sadd.s32 0, 0
      %14 = vsyncadd [#allocation4], 0
      %s15 = smul.addr %s12, 8
      %s16 = scalar_lea.hbm %s0, %s15
      %s17 = sshll.u32 %s16, 4
      %s18 = int_to_ptr.hbm [resolvable:$true] %s17
      %s19 = sshll.u32 [#allocation3], 4
      %s20 = int_to_ptr.vmem [resolvable:$true] %s19
      %25 = dma.hbm_to_vmem [thread:$0]  %s18, 512, %s20, [#allocation4], 128, 128, 8
    $region5: #{tpu_custom_call.1} parent=1 // pred_fallthru
      _
    // Predicated region
    $region6: #{tpu_custom_call.1} parent=1 // pred_check
      _
    $region7: #{tpu_custom_call.1} parent=1 // pred_check_branch
      %27 = sbr.rel (0) target = $region9
    $region8: #{tpu_custom_call.1} parent=1 // pred_region
      %s28 = sadd.s32 0, 0
      %30 = vsyncadd [#allocation7], 0
      %s31 = smul.addr %s28, 8
      %s32 = scalar_lea.hbm %s1, %s31
      %s33 = sshll.u32 %s32, 4
      %s34 = int_to_ptr.hbm [resolvable:$true] %s33
      %s35 = sshll.u32 [#allocation6], 4
      %s36 = int_to_ptr.vmem [resolvable:$true] %s35
      %41 = dma.hbm_to_vmem [thread:$0]  %s34, 512, %s36, [#allocation7], 128, 128, 8
    $region9: #{tpu_custom_call.1} parent=1 // pred_fallthru
      _
    // Predicated region
    $region10: #{tpu_custom_call.1} parent=1 // pred_check
      _
    $region11: #{tpu_custom_call.1} parent=1 // pred_check_branch
      %43 = sbr.rel (0) target = $region13
    $region12: #{tpu_custom_call.1} parent=1 // pred_region
      %45 = dma.done [#allocation4], 512
    $region13: #{tpu_custom_call.1} parent=1 // pred_fallthru
      _
    // Predicated region
    $region14: #{tpu_custom_call.1} parent=1 // pred_check
      _
    $region15: #{tpu_custom_call.1} parent=1 // pred_check_branch
      %47 = sbr.rel (0) target = $region17
    $region16: #{tpu_custom_call.1} parent=1 // pred_region
      %49 = dma.done [#allocation7], 512
    $region17: #{tpu_custom_call.1} parent=1 // pred_fallthru
      _
    %s50 = sadd.s32 0, 0
    %s51 = sadd.s32 0, 0
    %p52 = scmp.eq.s32.totalorder 0, 0
    // Predicated region
    $region18: #{tpu_custom_call.1} parent=1 // pred_check
      %p53 = pneg %p52
    $region19: #{tpu_custom_call.1} parent=1 // pred_check_branch
      %55 = sbr.rel (%p53) target = $region21
    $region20: #{tpu_custom_call.1} parent=1 // pred_region
      %56 = vst [vmem:[#allocation2] sm:$0xff] 0.0
    $region21: #{tpu_custom_call.1} parent=1 // pred_fallthru
      _
    %v57 = vld [vmem:[#allocation3] sm:$0xff]
    %v58 = vld [vmem:[#allocation3 + $0x8] sm:$0xff]
    %v59 = vld [vmem:[#allocation3 + $0x10] sm:$0xff]
    %v60 = vld [vmem:[#allocation3 + $0x18] sm:$0xff]
    %v61 = vld [vmem:[#allocation6] sm:$0xff]
    %v62 = vld [vmem:[#allocation6 + $0x8] sm:$0xff]
    %v63 = vld [vmem:[#allocation6 + $0x10] sm:$0xff]
    %v64 = vld [vmem:[#allocation6 + $0x18] sm:$0xff]
    %v65 = vadd.f32 %v61, %v63
    %v66 = vadd.f32 %v62, %v64
    %v67 = vmul.f32 %v65, %v66
    %v68 = vadd.f32 %v57, %v59
    %v69 = vadd.f32 %v58, %v60
    %v70 = vmul.f32 %v68, %v69
    %v71 = vmin.f32 %v57, %v61
    %v72 = vmin.f32 %v59, %v63
    %v73 = vadd.f32 %v71, %v72
    %v74 = vmin.f32 %v60, %v64
    %v75 = vmin.f32 %v58, %v62
    %v76 = vadd.f32 %v74, %v75
    %v77 = vmul.f32 %v73, %v76
    %v78 = vadd.f32 %v67, %v70
    %v79 = vsub.f32 %v78, %v77
    %v80 = vmax.f32 %v79, 1e-05
    %v81 = vrcp.pop %v80
    %v82 = vmul.f32 %v80, %v81
    %v83 = vsub.f32 1.0, %v82
    %v84 = vmul.f32 %v81, %v83
    %v85 = vadd.f32 %v81, %v84
    %vm86 = vweird.f32 %v80
    %vm87 = vweird.f32 %v81
    %vm88 = vmor %vm86, %vm87
    %v89 = vsel %vm88, %v81, %v85
    %v90 = vand.u32 2147483647, %v80
    %vm91 = vcmp.eq.f32.partialorder %v90, 8.507059e+37
    %v92 = vand.u32 %v80, 2147483648
    %v93 = vor.u32 1.1754944e-38, %v92
    %v94 = vsel %vm91, %v93, %v89
    %v95 = vmul.f32 %v77, %v94
    %v96 = vsub.f32 1.0, %v95
    %s97 = sadd.s32 0, 0
    %s98 = smul.u32 %s97, 1024
    %s99 = sadd.s32 %s98, 1024
    %p100 = scmp.gt.s32.totalorder %s99, 200
    %p101 = scmp.le.s32.totalorder %s99, 200
    // Predicated region
    $region22: #{tpu_custom_call.1} parent=1 // pred_check
      %p102 = pneg %p101
    $region23: #{tpu_custom_call.1} parent=1 // pred_check_branch
      %104 = sbr.rel (%p102) target = $region25
    $region24: #{tpu_custom_call.1} parent=1 // pred_region
      %v105 = vld [vmem:[#allocation2] sm:$0xff]
      %v106 = vadd.f32 %v105, %v96
      %107 = vst [vmem:[#allocation2] sm:$0xff] %v106
    $region25: #{tpu_custom_call.1} parent=1 // pred_fallthru
      _
    // Predicated region
    $region26: #{tpu_custom_call.1} parent=1 // pred_check
      %p108 = pneg %p100
    $region27: #{tpu_custom_call.1} parent=1 // pred_check_branch
      %110 = sbr.rel (%p108) target = $region29
    $region28: #{tpu_custom_call.1} parent=1 // pred_region
      %v111 = vlaneseq
      %v112 = vshrl.u32 %v111, 7
      %v113 = vlaneseq
      %v114 = vand.u32 %v113, 127
      %v115 = vmul.u32 %v112, 128
      %v116 = vstv %s98
      %v117 = vadd.s32 %v116, %v115
      %v118 = vadd.s32 %v117, %v114
      %vm119 = vcmp.lt.s32.totalorder %v118, 200
      %v120 = vsel %vm119, %v96, 0.0
      %v121 = vld [vmem:[#allocation2] sm:$0xff]
      %v122 = vadd.f32 %v121, %v120
      %123 = vst [vmem:[#allocation2] sm:$0xff] %v122
    $region29: #{tpu_custom_call.1} parent=1 // pred_fallthru
      _
    // Predicated region
    $region30: #{tpu_custom_call.1} parent=1 // pred_check
      %p124 = pneg %p52
    $region31: #{tpu_custom_call.1} parent=1 // pred_check_branch
      %126 = sbr.rel (%p124) target = $region33
    $region32: #{tpu_custom_call.1} parent=1 // pred_region
      %v127 = vld [vmem:[#allocation2] sm:$0xff]
      %128 = vst [vmem:[#allocation8] sm:$0xff] %v127
    $region33: #{tpu_custom_call.1} parent=1 // pred_fallthru
      _
    // Predicated region
    $region34: #{tpu_custom_call.1} parent=1 // pred_check
      _
    $region35: #{tpu_custom_call.1} parent=1 // pred_check_branch
      %130 = sbr.rel (0) target = $region37
    $region36: #{tpu_custom_call.1} parent=1 // pred_region
      %132 = vsyncadd [#allocation5], 0
      %s134 = sshll.u32 [#allocation8], 4
      %s135 = int_to_ptr.vmem [resolvable:$true] %s134
      %s136 = sshll.u32 %s2, 4
      %s137 = int_to_ptr.hbm [resolvable:$true] %s136
      %139 = dma.vmem_to_hbm [thread:$0]  %s135, 128, %s137, [#allocation5]
    $region37: #{tpu_custom_call.1} parent=1 // pred_fallthru
      _
    // Predicated region
    $region38: #{tpu_custom_call.1} parent=1 // pred_check
      _
    $region39: #{tpu_custom_call.1} parent=1 // pred_check_branch
      %141 = sbr.rel (0) target = $region41
    $region40: #{tpu_custom_call.1} parent=1 // pred_region
      %143 = dma.done [#allocation5], 128
    $region41: #{tpu_custom_call.1} parent=1 // pred_fallthru
      _
    %144 = vsyncpa [#allocation4], 1
    %145 = vsyncpa [#allocation7], 1
    %146 = vsyncpa [#allocation5], 1

</llo_original>
